<compile_context>
chip_gen: v5e
topology: v5e:2x2
jax: 0.10.0
libtpu: 0.0.40
codegen_flags: <defaults>
</compile_context>

<pallas_src>
import jax
import jax.numpy as jnp
from jax.experimental import pallas as pl
from jax.experimental.pallas import tpu as pltpu

LANE = 128


def _round_up(x, m):
    return ((x + m - 1) // m) * m


def dqn_kernel(x_ref, w0_ref, b0_ref, w1_ref, b1_ref, w2_ref, b2_ref, o_ref):
    # SimpleBody: h0 = relu(x @ W0 + b0)          -> (TM, 128)
    h0 = jnp.dot(x_ref[...], w0_ref[...], preferred_element_type=jnp.float32)
    h0 = jnp.maximum(h0 + b0_ref[...], 0.0).astype(jnp.bfloat16)
    # DQN.fc1:    h1 = relu(h0 @ W1 + b1)         -> (TM, 512)
    h1 = jnp.dot(h0, w1_ref[...], preferred_element_type=jnp.float32)
    h1 = jnp.maximum(h1 + b1_ref[...], 0.0).astype(jnp.bfloat16)
    # DQN.fc2:    q = h1 @ W2 + b2                -> (TM, N_pad), no activation
    q = jnp.dot(h1, w2_ref[...], preferred_element_type=jnp.float32)
    o_ref[...] = (q + b2_ref[...]).astype(o_ref.dtype)


def dqn_forward(x, params, *, batch_tile=256):
    """x: (B, D_in) float32; params: (in,out) weights and (1,out) biases (f32)."""
    B, D_in = x.shape
    H0 = params["w0"].shape[1]          # 128 (SimpleBody feature size)
    H1 = params["w1"].shape[1]          # 512
    num_actions = params["w2"].shape[1]

    # Lane-dense padding of the small feature / action dims (done once here).
    D_pad = _round_up(D_in, LANE)
    N_pad = _round_up(num_actions, LANE)

    # Batch tiling: TM rows per grid step (MXU-friendly); pad B up to a
    # multiple of TM (or of 8 if B is tiny).
    B8 = _round_up(B, 8)
    TM = B8 if B8 < batch_tile else batch_tile
    B_pad = _round_up(B, TM)

    x_bf16 = x.astype(jnp.bfloat16)
    if (B_pad, D_pad) == (B, D_in):
        xp = x_bf16
    else:
        xp = jnp.zeros((B_pad, D_pad), jnp.bfloat16).at[:B, :D_in].set(x_bf16)

    w0 = params["w0"].astype(jnp.bfloat16)
    if D_pad != D_in:
        w0 = jnp.zeros((D_pad, H0), jnp.bfloat16).at[:D_in, :].set(w0)
    w1 = params["w1"].astype(jnp.bfloat16)
    w2 = params["w2"].astype(jnp.bfloat16)
    b2 = params["b2"].astype(jnp.float32)
    if N_pad != num_actions:
        w2 = jnp.zeros((H1, N_pad), jnp.bfloat16).at[:, :num_actions].set(w2)
        b2 = jnp.zeros((1, N_pad), jnp.float32).at[:, :num_actions].set(b2)
    b0 = params["b0"].astype(jnp.float32)
    b1 = params["b1"].astype(jnp.float32)

    grid = (B_pad // TM,)

    out = pl.pallas_call(
        dqn_kernel,
        out_shape=jax.ShapeDtypeStruct((B_pad, N_pad), jnp.float32),
        grid_spec=pltpu.PrefetchScalarGridSpec(
            num_scalar_prefetch=0,
            grid=grid,
            in_specs=[
                pl.BlockSpec((TM, D_pad), lambda i: (i, 0)),   # x batch tile
                pl.BlockSpec((D_pad, H0), lambda i: (0, 0)),   # W0 (resident)
                pl.BlockSpec((1, H0),     lambda i: (0, 0)),   # b0
                pl.BlockSpec((H0, H1),    lambda i: (0, 0)),   # W1
                pl.BlockSpec((1, H1),     lambda i: (0, 0)),   # b1
                pl.BlockSpec((H1, N_pad), lambda i: (0, 0)),   # W2
                pl.BlockSpec((1, N_pad),  lambda i: (0, 0)),   # b2
            ],
            out_specs=pl.BlockSpec((TM, N_pad), lambda i: (i, 0)),
        ),
        compiler_params=pltpu.CompilerParams(
            dimension_semantics=("parallel",),
            vmem_limit_bytes=32 * 1024 * 1024,
        ),
    )(xp, w0, b0, w1, b1, w2, b2)

    if (B_pad, N_pad) == (B, num_actions):
        return out
    return out[:B, :num_actions]


def _linear_init(key, fan_in, fan_out):
    """Matches nn.Linear default init: U(-1/sqrt(fan_in), 1/sqrt(fan_in))."""
    kw, kb = jax.random.split(key)
    bound = 1.0 / jnp.sqrt(jnp.float32(fan_in))
    w = jax.random.uniform(kw, (fan_in, fan_out), jnp.float32, -bound, bound)
    b = jax.random.uniform(kb, (1, fan_out), jnp.float32, -bound, bound)
    return w, b


def init_dqn_params(key, input_dim, num_actions):
    k0, k1, k2 = jax.random.split(key, 3)
    w0, b0 = _linear_init(k0, input_dim, 128)    # SimpleBody.fc1
    w1, b1 = _linear_init(k1, 128, 512)          # DQN.fc1
    w2, b2 = _linear_init(k2, 512, num_actions)  # DQN.fc2
    return {"w0": w0, "b0": b0, "w1": w1, "b1": b1, "w2": w2, "b2": b2}


if __name__ == "__main__":
    # Small shapes consistent with the module: input_shape=(16,), num_actions=4, batch=8.
    # TODO(synk): noisy=True path (NoisyLinear + sample_noise) not implemented;
    # this kernel covers the default noisy=False forward pass.
    B, D_IN, NUM_ACTIONS = 8, 16, 4

    key = jax.random.PRNGKey(0)
    kx, kp = jax.random.split(key)
    x = jax.random.normal(kx, (B, D_IN), dtype=jnp.float32)
    params = init_dqn_params(kp, D_IN, NUM_ACTIONS)

    q = dqn_forward(x, params)
    jax.block_until_ready(q)

    # Plain-JAX f32 reference of the same forward pass (bf16 MXU inputs in the
    # kernel -> compare with a tolerance appropriate for bf16 rounding).
    h0 = jnp.maximum(x @ params["w0"] + params["b0"], 0.0)
    h1 = jnp.maximum(h0 @ params["w1"] + params["b1"], 0.0)
    q_ref = h1 @ params["w2"] + params["b2"]

    assert q.shape == (B, NUM_ACTIONS)
    assert jnp.allclose(q, q_ref, atol=2e-2, rtol=2e-2), (
        float(jnp.max(jnp.abs(q - q_ref))))

    print("KERNEL_OK")
</pallas_src>

<mosaic_0001>
module attributes {stable_mosaic.version = 11 : i64} {
  func.func @dqn_kernel(%arg0: i32, %arg1: memref<8x128xbf16, #tpu.memory_space<vmem>>, %arg2: memref<128x128xbf16, #tpu.memory_space<vmem>>, %arg3: memref<1x128xf32, #tpu.memory_space<vmem>>, %arg4: memref<128x512xbf16, #tpu.memory_space<vmem>>, %arg5: memref<1x512xf32, #tpu.memory_space<vmem>>, %arg6: memref<512x128xbf16, #tpu.memory_space<vmem>>, %arg7: memref<1x128xf32, #tpu.memory_space<vmem>>, %arg8: memref<8x128xf32, #tpu.memory_space<vmem>>) attributes {dimension_semantics = [#tpu.dimension_semantics<parallel>], iteration_bounds = array<i64: 1>, scalar_prefetch = 0 : i64, scratch_operands = 0 : i64, tpu.core_type = #tpu.core_type<tc>, window_params = [{transform_indices = @transform_0, window_bounds = array<i64: 8, 128>}, {pipeline_mode = #tpu.pipeline_mode<synchronous>, transform_indices = @transform_1, window_bounds = array<i64: 128, 128>}, {pipeline_mode = #tpu.pipeline_mode<synchronous>, transform_indices = @transform_2, window_bounds = array<i64: 1, 128>}, {pipeline_mode = #tpu.pipeline_mode<synchronous>, transform_indices = @transform_3, window_bounds = array<i64: 128, 512>}, {pipeline_mode = #tpu.pipeline_mode<synchronous>, transform_indices = @transform_4, window_bounds = array<i64: 1, 512>}, {pipeline_mode = #tpu.pipeline_mode<synchronous>, transform_indices = @transform_5, window_bounds = array<i64: 512, 128>}, {pipeline_mode = #tpu.pipeline_mode<synchronous>, transform_indices = @transform_6, window_bounds = array<i64: 1, 128>}, {transform_indices = @transform_7, window_bounds = array<i64: 8, 128>}]} {
    %c0 = arith.constant 0 : index
    %c0_0 = arith.constant 0 : index
    %0 = vector.load %arg1[%c0, %c0_0] : memref<8x128xbf16, #tpu.memory_space<vmem>>, vector<8x128xbf16>
    %c0_1 = arith.constant 0 : index
    %c0_2 = arith.constant 0 : index
    %1 = vector.load %arg2[%c0_1, %c0_2] : memref<128x128xbf16, #tpu.memory_space<vmem>>, vector<128x128xbf16>
    %cst = arith.constant dense<0.000000e+00> : vector<8x128xf32>
    %2 = tpu.matmul %0, %1, %cst {dimension_numbers = #tpu.dot_dimension_numbers<[1], [0], [0], [1], [0, 0, 1, 1], [], []>} : vector<8x128xbf16>, vector<128x128xbf16>, vector<8x128xf32> -> vector<8x128xf32>
    %c0_3 = arith.constant 0 : index
    %c0_4 = arith.constant 0 : index
    %3 = vector.load %arg3[%c0_3, %c0_4] : memref<1x128xf32, #tpu.memory_space<vmem>>, vector<1x128xf32>
    %4 = vector.broadcast %3 : vector<1x128xf32> to vector<8x128xf32>
    %5 = arith.addf %2, %4 : vector<8x128xf32>
    %cst_5 = arith.constant 0.000000e+00 : f32
    %6 = vector.broadcast %cst_5 : f32 to vector<8x128xf32>
    %7 = arith.maximumf %5, %6 : vector<8x128xf32>
    %8 = arith.truncf %7 : vector<8x128xf32> to vector<8x128xbf16>
    %c0_6 = arith.constant 0 : index
    %c0_7 = arith.constant 0 : index
    %9 = vector.load %arg4[%c0_6, %c0_7] : memref<128x512xbf16, #tpu.memory_space<vmem>>, vector<128x512xbf16>
    %cst_8 = arith.constant dense<0.000000e+00> : vector<8x512xf32>
    %10 = tpu.matmul %8, %9, %cst_8 {dimension_numbers = #tpu.dot_dimension_numbers<[1], [0], [0], [1], [0, 0, 1, 1], [], []>} : vector<8x128xbf16>, vector<128x512xbf16>, vector<8x512xf32> -> vector<8x512xf32>
    %c0_9 = arith.constant 0 : index
    %c0_10 = arith.constant 0 : index
    %11 = vector.load %arg5[%c0_9, %c0_10] : memref<1x512xf32, #tpu.memory_space<vmem>>, vector<1x512xf32>
    %12 = vector.broadcast %11 : vector<1x512xf32> to vector<8x512xf32>
    %13 = arith.addf %10, %12 : vector<8x512xf32>
    %cst_11 = arith.constant 0.000000e+00 : f32
    %14 = vector.broadcast %cst_11 : f32 to vector<8x512xf32>
    %15 = arith.maximumf %13, %14 : vector<8x512xf32>
    %16 = arith.truncf %15 : vector<8x512xf32> to vector<8x512xbf16>
    %c0_12 = arith.constant 0 : index
    %c0_13 = arith.constant 0 : index
    %17 = vector.load %arg6[%c0_12, %c0_13] : memref<512x128xbf16, #tpu.memory_space<vmem>>, vector<512x128xbf16>
    %cst_14 = arith.constant dense<0.000000e+00> : vector<8x128xf32>
    %18 = tpu.matmul %16, %17, %cst_14 {dimension_numbers = #tpu.dot_dimension_numbers<[1], [0], [0], [1], [0, 0, 1, 1], [], []>} : vector<8x512xbf16>, vector<512x128xbf16>, vector<8x128xf32> -> vector<8x128xf32>
    %c0_15 = arith.constant 0 : index
    %c0_16 = arith.constant 0 : index
    %19 = vector.load %arg7[%c0_15, %c0_16] : memref<1x128xf32, #tpu.memory_space<vmem>>, vector<1x128xf32>
    %20 = vector.broadcast %19 : vector<1x128xf32> to vector<8x128xf32>
    %21 = arith.addf %18, %20 : vector<8x128xf32>
    %c0_17 = arith.constant 0 : index
    %c0_18 = arith.constant 0 : index
    %22 = vector.load %arg8[%c0_17, %c0_18] : memref<8x128xf32, #tpu.memory_space<vmem>>, vector<8x128xf32>
    tpu.vector_store %arg8[%c0_17, %c0_18], %21 {strides = array<i32>} : memref<8x128xf32, #tpu.memory_space<vmem>>, vector<8x128xf32>,
    return
  }
  func.func @transform_0(%arg0: i32) -> (i32, i32) {
    %c0_i32 = arith.constant 0 : i32
    %c0_i32_0 = arith.constant 0 : i32
    return %arg0, %c0_i32 : i32, i32
  }
  func.func @transform_1(%arg0: i32) -> (i32, i32) {
    %c0_i32 = arith.constant 0 : i32
    %c0_i32_0 = arith.constant 0 : i32
    %c0_i32_1 = arith.constant 0 : i32
    return %c0_i32, %c0_i32_0 : i32, i32
  }
  func.func @transform_2(%arg0: i32) -> (i32, i32) {
    %c0_i32 = arith.constant 0 : i32
    %c0_i32_0 = arith.constant 0 : i32
    %c0_i32_1 = arith.constant 0 : i32
    return %c0_i32, %c0_i32_0 : i32, i32
  }
  func.func @transform_3(%arg0: i32) -> (i32, i32) {
    %c0_i32 = arith.constant 0 : i32
    %c0_i32_0 = arith.constant 0 : i32
    %c0_i32_1 = arith.constant 0 : i32
    return %c0_i32, %c0_i32_0 : i32, i32
  }
  func.func @transform_4(%arg0: i32) -> (i32, i32) {
    %c0_i32 = arith.constant 0 : i32
    %c0_i32_0 = arith.constant 0 : i32
    %c0_i32_1 = arith.constant 0 : i32
    return %c0_i32, %c0_i32_0 : i32, i32
  }
  func.func @transform_5(%arg0: i32) -> (i32, i32) {
    %c0_i32 = arith.constant 0 : i32
    %c0_i32_0 = arith.constant 0 : i32
    %c0_i32_1 = arith.constant 0 : i32
    return %c0_i32, %c0_i32_0 : i32, i32
  }
  func.func @transform_6(%arg0: i32) -> (i32, i32) {
    %c0_i32 = arith.constant 0 : i32
    %c0_i32_0 = arith.constant 0 : i32
    %c0_i32_1 = arith.constant 0 : i32
    return %c0_i32, %c0_i32_0 : i32, i32
  }
  func.func @transform_7(%arg0: i32) -> (i32, i32) {
    %c0_i32 = arith.constant 0 : i32
    %c0_i32_0 = arith.constant 0 : i32
    return %arg0, %c0_i32 : i32, i32
  }
}

</mosaic_0001>

<llo_original>
// kernel: tpu_custom_call.1
$region0: #{tpu_custom_call.1}
  #allocation0 [shape = 'u32[]', space=smem, size = 0x4, offset = 0x4, fixed_abs, tag = 'smem constant byte address 0x4 - core index']
  #allocation1 [shape = 'u32[72,128]{1,0:T(1,128)}', space=vmem, size = 0x9000, scoped, tag = 'internal scratch']
  %s0 = inlined_call_operand.hbm [shape: bf16[8,128], index: 0, kind: input, shape index: {}]
  %s1 = inlined_call_operand.hbm [shape: bf16[128,128], index: 1, kind: input, shape index: {}]
  %s2 = inlined_call_operand.vmem [shape: f32[1,128], index: 2, kind: input, shape index: {}]
  %s3 = inlined_call_operand.hbm [shape: bf16[128,512], index: 3, kind: input, shape index: {}]
  %s4 = inlined_call_operand.hbm [shape: f32[1,512], index: 4, kind: input, shape index: {}]
  %s5 = inlined_call_operand.hbm [shape: bf16[512,128], index: 5, kind: input, shape index: {}]
  %s6 = inlined_call_operand.vmem [shape: f32[1,128], index: 6, kind: input, shape index: {}]
  %s7 = inlined_call_operand.hbm [shape: f32[8,128], index: 7, kind: output, shape index: {}]
  %s8 = sld [smem:[#allocation0]]
  $region58: #{tpu_custom_call.1} parent=0
    _
  %s10 = ssub.s32 1, %s8
  %s11 = scalar_select 0, %s10, %s8
  $region1: #{tpu_custom_call.1} parent=0
    #allocation2 [shape = 'u8[2048]{0}', space=vmem, size = 0x800, scoped, tag = 'input window, operand 0, single buffered']
    #allocation3 [shape = 's32[1]{0}', space=sflag, size = 0x4, scoped, tag = 'scoped memory for tpu_custom_call.1']
    #allocation4 [shape = 's32[1]{0}', space=sflag, size = 0x4, scoped, tag = 'scoped memory for tpu_custom_call.1']
    #allocation5 [shape = 'u8[32768]{0}', space=vmem, size = 0x8000, scoped, tag = 'input window, operand 1, single buffered']
    #allocation6 [shape = 's32[1]{0}', space=sflag, size = 0x4, scoped, tag = 'scoped memory for tpu_custom_call.1']
    #allocation7 [shape = 'u8[131072]{0}', space=vmem, size = 0x20000, scoped, tag = 'input window, operand 3, single buffered']
    #allocation8 [shape = 'u8[2048]{0}', space=vmem, size = 0x800, scoped, tag = 'input window, operand 4, single buffered']
    #allocation9 [shape = 's32[1]{0}', space=sflag, size = 0x4, scoped, tag = 'scoped memory for tpu_custom_call.1']
    #allocation10 [shape = 'u8[131072]{0}', space=vmem, size = 0x20000, scoped, tag = 'input window, operand 5, single buffered']
    #allocation11 [shape = 'u8[4096]{0}', space=vmem, size = 0x1000, scoped, tag = 'output window, operand 0, single buffered']
    %12 = vsyncpa [#allocation3], 0
    %13 = vsyncpa [#allocation6], 0
    %14 = vsyncpa [#allocation9], 0
    %15 = vsyncpa [#allocation4], 0
    // Predicated region
    $region2: #{tpu_custom_call.1} parent=1 // pred_check
      _
    $region3: #{tpu_custom_call.1} parent=1 // pred_check_branch
      %17 = sbr.rel (0) target = $region5
    $region4: #{tpu_custom_call.1} parent=1 // pred_region
      %19 = vsyncadd [#allocation3], 0
      %s21 = sshll.u32 %s0, 4
      %s22 = int_to_ptr.hbm [resolvable:$true] %s21
      %s23 = sshll.u32 [#allocation2], 4
      %s24 = int_to_ptr.vmem [resolvable:$true] %s23
      %26 = dma.hbm_to_vmem [thread:$0]  %s22, 64, %s24, [#allocation3]
    $region5: #{tpu_custom_call.1} parent=1 // pred_fallthru
      _
    // Predicated region
    $region6: #{tpu_custom_call.1} parent=1 // pred_check
      _
    $region7: #{tpu_custom_call.1} parent=1 // pred_check_branch
      %28 = sbr.rel (0) target = $region9
    $region8: #{tpu_custom_call.1} parent=1 // pred_region
      %30 = vsyncadd [#allocation6], 0
      %s31 = sshll.u32 %s1, 4
      %s32 = int_to_ptr.hbm [resolvable:$true] %s31
      %s33 = sshll.u32 [#allocation5], 4
      %s34 = int_to_ptr.vmem [resolvable:$true] %s33
      %39 = dma.hbm_to_vmem [thread:$0]  %s32, 1024, %s34, [#allocation6], 64, 64, 4
    $region9: #{tpu_custom_call.1} parent=1 // pred_fallthru
      _
    // Predicated region
    $region10: #{tpu_custom_call.1} parent=1 // pred_check
      _
    $region11: #{tpu_custom_call.1} parent=1 // pred_check_branch
      %41 = sbr.rel (0) target = $region13
    $region12: #{tpu_custom_call.1} parent=1 // pred_region
      _
    $region13: #{tpu_custom_call.1} parent=1 // pred_fallthru
      _
    // Predicated region
    $region14: #{tpu_custom_call.1} parent=1 // pred_check
      _
    $region15: #{tpu_custom_call.1} parent=1 // pred_check_branch
      %43 = sbr.rel (0) target = $region17
    $region16: #{tpu_custom_call.1} parent=1 // pred_region
      %45 = vsyncadd [#allocation6], 0
      %s46 = sshll.u32 %s3, 4
      %s47 = int_to_ptr.hbm [resolvable:$true] %s46
      %s48 = sshll.u32 [#allocation7], 4
      %s49 = int_to_ptr.vmem [resolvable:$true] %s48
      %54 = dma.hbm_to_vmem [thread:$0]  %s47, 4096, %s49, [#allocation6], 256, 256, 16
    $region17: #{tpu_custom_call.1} parent=1 // pred_fallthru
      _
    // Predicated region
    $region18: #{tpu_custom_call.1} parent=1 // pred_check
      _
    $region19: #{tpu_custom_call.1} parent=1 // pred_check_branch
      %56 = sbr.rel (0) target = $region21
    $region20: #{tpu_custom_call.1} parent=1 // pred_region
      %58 = vsyncadd [#allocation9], 0
      %s60 = sshll.u32 %s4, 4
      %s61 = int_to_ptr.hbm [resolvable:$true] %s60
      %s62 = sshll.u32 [#allocation8], 4
      %s63 = int_to_ptr.vmem [resolvable:$true] %s62
      %65 = dma.hbm_to_vmem [thread:$0]  %s61, 64, %s63, [#allocation9]
    $region21: #{tpu_custom_call.1} parent=1 // pred_fallthru
      _
    // Predicated region
    $region22: #{tpu_custom_call.1} parent=1 // pred_check
      _
    $region23: #{tpu_custom_call.1} parent=1 // pred_check_branch
      %67 = sbr.rel (0) target = $region25
    $region24: #{tpu_custom_call.1} parent=1 // pred_region
      %69 = vsyncadd [#allocation9], 0
      %s70 = sshll.u32 %s5, 4
      %s71 = int_to_ptr.hbm [resolvable:$true] %s70
      %s72 = sshll.u32 [#allocation10], 4
      %s73 = int_to_ptr.vmem [resolvable:$true] %s72
      %78 = dma.hbm_to_vmem [thread:$0]  %s71, 4096, %s73, [#allocation9], 64, 64, 4
    $region25: #{tpu_custom_call.1} parent=1 // pred_fallthru
      _
    // Predicated region
    $region26: #{tpu_custom_call.1} parent=1 // pred_check
      _
    $region27: #{tpu_custom_call.1} parent=1 // pred_check_branch
      %80 = sbr.rel (0) target = $region29
    $region28: #{tpu_custom_call.1} parent=1 // pred_region
      _
    $region29: #{tpu_custom_call.1} parent=1 // pred_fallthru
      _
    // Predicated region
    $region30: #{tpu_custom_call.1} parent=1 // pred_check
      _
    $region31: #{tpu_custom_call.1} parent=1 // pred_check_branch
      %82 = sbr.rel (0) target = $region33
    $region32: #{tpu_custom_call.1} parent=1 // pred_region
      %84 = dma.done [#allocation3], 64
    $region33: #{tpu_custom_call.1} parent=1 // pred_fallthru
      _
    // Predicated region
    $region34: #{tpu_custom_call.1} parent=1 // pred_check
      _
    $region35: #{tpu_custom_call.1} parent=1 // pred_check_branch
      %86 = sbr.rel (0) target = $region37
    $region36: #{tpu_custom_call.1} parent=1 // pred_region
      %88 = dma.done [#allocation6], 1024
    $region37: #{tpu_custom_call.1} parent=1 // pred_fallthru
      _
    // Predicated region
    $region38: #{tpu_custom_call.1} parent=1 // pred_check
      _
    $region39: #{tpu_custom_call.1} parent=1 // pred_check_branch
      %90 = sbr.rel (0) target = $region41
    $region40: #{tpu_custom_call.1} parent=1 // pred_region
      %92 = dma.done [#allocation6], 4096
    $region41: #{tpu_custom_call.1} parent=1 // pred_fallthru
      _
    // Predicated region
    $region42: #{tpu_custom_call.1} parent=1 // pred_check
      _
    $region43: #{tpu_custom_call.1} parent=1 // pred_check_branch
      %94 = sbr.rel (0) target = $region45
    $region44: #{tpu_custom_call.1} parent=1 // pred_region
      %96 = dma.done [#allocation9], 64
    $region45: #{tpu_custom_call.1} parent=1 // pred_fallthru
      _
    // Predicated region
    $region46: #{tpu_custom_call.1} parent=1 // pred_check
      _
    $region47: #{tpu_custom_call.1} parent=1 // pred_check_branch
      %98 = sbr.rel (0) target = $region49
    $region48: #{tpu_custom_call.1} parent=1 // pred_region
      %100 = dma.done [#allocation9], 4096
    $region49: #{tpu_custom_call.1} parent=1 // pred_fallthru
      _
    %v101 = vld [vmem:[#allocation2] sm:$0xf]
    %v102 = vld [vmem:[#allocation5] sm:$0xf]
    %v103 = vld [vmem:[#allocation5 + $0x4] sm:$0xf]
    %v104 = vld [vmem:[#allocation5 + $0x8] sm:$0xf]
    %v105 = vld [vmem:[#allocation5 + $0xc] sm:$0xf]
    %v106 = vld [vmem:[#allocation5 + $0x10] sm:$0xf]
    %v107 = vld [vmem:[#allocation5 + $0x14] sm:$0xf]
    %v108 = vld [vmem:[#allocation5 + $0x18] sm:$0xf]
    %v109 = vld [vmem:[#allocation5 + $0x1c] sm:$0xf]
    %v110 = vld [vmem:[#allocation5 + $0x20] sm:$0xf]
    %v111 = vld [vmem:[#allocation5 + $0x24] sm:$0xf]
    %v112 = vld [vmem:[#allocation5 + $0x28] sm:$0xf]
    %v113 = vld [vmem:[#allocation5 + $0x2c] sm:$0xf]
    %v114 = vld [vmem:[#allocation5 + $0x30] sm:$0xf]
    %v115 = vld [vmem:[#allocation5 + $0x34] sm:$0xf]
    %v116 = vld [vmem:[#allocation5 + $0x38] sm:$0xf]
    %v117 = vld [vmem:[#allocation5 + $0x3c] sm:$0xf]
    %v118 = vld [vmem:[%s2] sm:$0x1]
    %v120 = vperm.slane %v118, 0
    %v138 = vunpack.c.l.b16 %v102
    %v139 = vunpack.c.l.b16 %v103
    %v140 = vunpack.c.l.b16 %v104
    %v141 = vunpack.c.l.b16 %v105
    %v142 = vunpack.c.l.b16 %v106
    %v143 = vunpack.c.l.b16 %v107
    %v144 = vunpack.c.l.b16 %v108
    %v145 = vunpack.c.l.b16 %v109
    %v146 = vunpack.c.l.b16 %v110
    %v147 = vunpack.c.l.b16 %v111
    %v148 = vunpack.c.l.b16 %v112
    %v149 = vunpack.c.l.b16 %v113
    %v150 = vunpack.c.l.b16 %v114
    %v151 = vunpack.c.l.b16 %v115
    %v152 = vunpack.c.l.b16 %v116
    %v153 = vunpack.c.l.b16 %v117
    %v154 = vpack.c.b16 %v139, %v138
    %v155 = vpack.c.b16 %v141, %v140
    %v156 = vpack.c.b16 %v143, %v142
    %v157 = vpack.c.b16 %v145, %v144
    %v158 = vpack.c.b16 %v147, %v146
    %v159 = vpack.c.b16 %v149, %v148
    %v160 = vpack.c.b16 %v151, %v150
    %v161 = vpack.c.b16 %v153, %v152
    %170 = vmatpush.bf16.msra.mxu0 %v161
    %171 = vmatpush.bf16.msra.mxu0 %v160
    %172 = vmatpush.bf16.msra.mxu0 %v159
    %173 = vmatpush.bf16.msra.mxu0 %v158
    %174 = vmatpush.bf16.msra.mxu0 %v157
    %175 = vmatpush.bf16.msra.mxu0 %v156
    %176 = vmatpush.bf16.msra.mxu0 %v155
    %177 = vmatpush.bf16.msra.mxu0 %v154
    %178 = vmatmul.bf16.gmra.mxu0 %v101
    %v179 = vpop.f32.mrf.mxu0
    %v180 = vadd.f32 %v120, %v179
    %v181 = vpop.f32.mrf.mxu0
    %182 = vdwg.mxu0
    %v183 = vmax.f32 %v180, 0.0
    %v184 = vpack.c.bf16 %v183, %v183
    %v185 = vld [vmem:[#allocation7] sm:$0xff]
    %v186 = vld [vmem:[#allocation7 + $0x8] sm:$0xff]
    %v187 = vld [vmem:[#allocation7 + $0x10] sm:$0xff]
    %v188 = vld [vmem:[#allocation7 + $0x18] sm:$0xff]
    %v189 = vld [vmem:[#allocation7 + $0x20] sm:$0xff]
    %v190 = vld [vmem:[#allocation7 + $0x28] sm:$0xff]
    %v191 = vld [vmem:[#allocation7 + $0x30] sm:$0xff]
    %v192 = vld [vmem:[#allocation7 + $0x38] sm:$0xff]
    %v193 = vld [vmem:[#allocation7 + $0x40] sm:$0xff]
    %v194 = vld [vmem:[#allocation7 + $0x48] sm:$0xff]
    %v195 = vld [vmem:[#allocation7 + $0x50] sm:$0xff]
    %v196 = vld [vmem:[#allocation7 + $0x58] sm:$0xff]
    %v197 = vld [vmem:[#allocation7 + $0x60] sm:$0xff]
    %v198 = vld [vmem:[#allocation7 + $0x68] sm:$0xff]
    %v199 = vld [vmem:[#allocation7 + $0x70] sm:$0xff]
    %v200 = vld [vmem:[#allocation7 + $0x78] sm:$0xff]
    %v201 = vld [vmem:[#allocation7 + $0x80] sm:$0xff]
    %v202 = vld [vmem:[#allocation7 + $0x88] sm:$0xff]
    %v203 = vld [vmem:[#allocation7 + $0x90] sm:$0xff]
    %v204 = vld [vmem:[#allocation7 + $0x98] sm:$0xff]
    %v205 = vld [vmem:[#allocation7 + $0xa0] sm:$0xff]
    %v206 = vld [vmem:[#allocation7 + $0xa8] sm:$0xff]
    %v207 = vld [vmem:[#allocation7 + $0xb0] sm:$0xff]
    %v208 = vld [vmem:[#allocation7 + $0xb8] sm:$0xff]
    %v209 = vld [vmem:[#allocation7 + $0xc0] sm:$0xff]
    %v210 = vld [vmem:[#allocation7 + $0xc8] sm:$0xff]
    %v211 = vld [vmem:[#allocation7 + $0xd0] sm:$0xff]
    %v212 = vld [vmem:[#allocation7 + $0xd8] sm:$0xff]
    %v213 = vld [vmem:[#allocation7 + $0xe0] sm:$0xff]
    %v214 = vld [vmem:[#allocation7 + $0xe8] sm:$0xff]
    %v215 = vld [vmem:[#allocation7 + $0xf0] sm:$0xff]
    %v216 = vld [vmem:[#allocation7 + $0xf8] sm:$0xff]
    %v217 = vld [vmem:[#allocation8] sm:$0xf]
    %v219 = vperm.slane %v217, 0
    %v220 = vperm.slane %v217, 1
    %v221 = vperm.slane %v217, 2
    %v222 = vperm.slane %v217, 3
    %v259 = vunpack.c.l.b16 %v185
    %v260 = vunpack.c.h.b16 %v185
    %v261 = vunpack.c.l.b16 %v186
    %v262 = vunpack.c.h.b16 %v186
    %v263 = vunpack.c.l.b16 %v187
    %v264 = vunpack.c.h.b16 %v187
    %v265 = vunpack.c.l.b16 %v188
    %v266 = vunpack.c.h.b16 %v188
    %v267 = vunpack.c.l.b16 %v189
    %v268 = vunpack.c.h.b16 %v189
    %v269 = vunpack.c.l.b16 %v190
    %v270 = vunpack.c.h.b16 %v190
    %v271 = vunpack.c.l.b16 %v191
    %v272 = vunpack.c.h.b16 %v191
    %v273 = vunpack.c.l.b16 %v192
    %v274 = vunpack.c.h.b16 %v192
    %v275 = vunpack.c.l.b16 %v193
    %v276 = vunpack.c.h.b16 %v193
    %v277 = vunpack.c.l.b16 %v194
    %v278 = vunpack.c.h.b16 %v194
    %v279 = vunpack.c.l.b16 %v195
    %v280 = vunpack.c.h.b16 %v195
    %v281 = vunpack.c.l.b16 %v196
    %v282 = vunpack.c.h.b16 %v196
    %v283 = vunpack.c.l.b16 %v197
    %v284 = vunpack.c.h.b16 %v197
    %v285 = vunpack.c.l.b16 %v198
    %v286 = vunpack.c.h.b16 %v198
    %v287 = vunpack.c.l.b16 %v199
    %v288 = vunpack.c.h.b16 %v199
    %v289 = vunpack.c.l.b16 %v200
    %v290 = vunpack.c.h.b16 %v200
    %v291 = vunpack.c.l.b16 %v201
    %v292 = vunpack.c.h.b16 %v201
    %v293 = vunpack.c.l.b16 %v202
    %v294 = vunpack.c.h.b16 %v202
    %v295 = vunpack.c.l.b16 %v203
    %v296 = vunpack.c.h.b16 %v203
    %v297 = vunpack.c.l.b16 %v204
    %v298 = vunpack.c.h.b16 %v204
    %v299 = vunpack.c.l.b16 %v205
    %v300 = vunpack.c.h.b16 %v205
    %v301 = vunpack.c.l.b16 %v206
    %v302 = vunpack.c.h.b16 %v206
    %v303 = vunpack.c.l.b16 %v207
    %v304 = vunpack.c.h.b16 %v207
    %v305 = vunpack.c.l.b16 %v208
    %v306 = vunpack.c.h.b16 %v208
    %v307 = vunpack.c.l.b16 %v209
    %v308 = vunpack.c.h.b16 %v209
    %v309 = vunpack.c.l.b16 %v210
    %v310 = vunpack.c.h.b16 %v210
    %v311 = vunpack.c.l.b16 %v211
    %v312 = vunpack.c.h.b16 %v211
    %v313 = vunpack.c.l.b16 %v212
    %v314 = vunpack.c.h.b16 %v212
    %v315 = vunpack.c.l.b16 %v213
    %v316 = vunpack.c.h.b16 %v213
    %v317 = vunpack.c.l.b16 %v214
    %v318 = vunpack.c.h.b16 %v214
    %v319 = vunpack.c.l.b16 %v215
    %v320 = vunpack.c.h.b16 %v215
    %v321 = vunpack.c.l.b16 %v216
    %v322 = vunpack.c.h.b16 %v216
    %v323 = vpack.c.b16 %v263, %v259
    %v324 = vpack.c.b16 %v264, %v260
    %v325 = vpack.c.b16 %v265, %v261
    %v326 = vpack.c.b16 %v266, %v262
    %v327 = vpack.c.b16 %v271, %v267
    %v328 = vpack.c.b16 %v272, %v268
    %v329 = vpack.c.b16 %v273, %v269
    %v330 = vpack.c.b16 %v274, %v270
    %v331 = vpack.c.b16 %v279, %v275
    %v332 = vpack.c.b16 %v280, %v276
    %v333 = vpack.c.b16 %v281, %v277
    %v334 = vpack.c.b16 %v282, %v278
    %v335 = vpack.c.b16 %v287, %v283
    %v336 = vpack.c.b16 %v288, %v284
    %v337 = vpack.c.b16 %v289, %v285
    %v338 = vpack.c.b16 %v290, %v286
    %v339 = vpack.c.b16 %v295, %v291
    %v340 = vpack.c.b16 %v296, %v292
    %v341 = vpack.c.b16 %v297, %v293
    %v342 = vpack.c.b16 %v298, %v294
    %v343 = vpack.c.b16 %v303, %v299
    %v344 = vpack.c.b16 %v304, %v300
    %v345 = vpack.c.b16 %v305, %v301
    %v346 = vpack.c.b16 %v306, %v302
    %v347 = vpack.c.b16 %v311, %v307
    %v348 = vpack.c.b16 %v312, %v308
    %v349 = vpack.c.b16 %v313, %v309
    %v350 = vpack.c.b16 %v314, %v310
    %v351 = vpack.c.b16 %v319, %v315
    %v352 = vpack.c.b16 %v320, %v316
    %v353 = vpack.c.b16 %v321, %v317
    %v354 = vpack.c.b16 %v322, %v318
    %387 = vmatpush.bf16.msra.mxu0 %v351
    %388 = vmatpush.bf16.msra.mxu0 %v347
    %389 = vmatpush.bf16.msra.mxu0 %v343
    %390 = vmatpush.bf16.msra.mxu0 %v339
    %391 = vmatpush.bf16.msra.mxu0 %v335
    %392 = vmatpush.bf16.msra.mxu0 %v331
    %393 = vmatpush.bf16.msra.mxu0 %v327
    %394 = vmatpush.bf16.msra.mxu0 %v323
    %395 = vmatmul.bf16.gmra.mxu0 %v184
    %v396 = vpop.f32.mrf.mxu0
    %v397 = vadd.f32 %v219, %v396
    %v398 = vpop.f32.mrf.mxu0
    %399 = vdwg.mxu0
    %400 = vmatpush.bf16.msra.mxu0 %v352
    %401 = vmatpush.bf16.msra.mxu0 %v348
    %402 = vmatpush.bf16.msra.mxu0 %v344
    %403 = vmatpush.bf16.msra.mxu0 %v340
    %404 = vmatpush.bf16.msra.mxu0 %v336
    %405 = vmatpush.bf16.msra.mxu0 %v332
    %406 = vmatpush.bf16.msra.mxu0 %v328
    %407 = vmatpush.bf16.msra.mxu0 %v324
    %408 = vmatmul.bf16.gmra.mxu0 %v184
    %v409 = vpop.f32.mrf.mxu0
    %v410 = vadd.f32 %v220, %v409
    %v411 = vpop.f32.mrf.mxu0
    %412 = vdwg.mxu0
    %413 = vmatpush.bf16.msra.mxu0 %v353
    %414 = vmatpush.bf16.msra.mxu0 %v349
    %415 = vmatpush.bf16.msra.mxu0 %v345
    %416 = vmatpush.bf16.msra.mxu0 %v341
    %417 = vmatpush.bf16.msra.mxu0 %v337
    %418 = vmatpush.bf16.msra.mxu0 %v333
    %419 = vmatpush.bf16.msra.mxu0 %v329
    %420 = vmatpush.bf16.msra.mxu0 %v325
    %421 = vmatmul.bf16.gmra.mxu0 %v184
    %v422 = vpop.f32.mrf.mxu0
    %v423 = vadd.f32 %v221, %v422
    %v424 = vpop.f32.mrf.mxu0
    %425 = vdwg.mxu0
    %426 = vmatpush.bf16.msra.mxu0 %v354
    %427 = vmatpush.bf16.msra.mxu0 %v350
    %428 = vmatpush.bf16.msra.mxu0 %v346
    %429 = vmatpush.bf16.msra.mxu0 %v342
    %430 = vmatpush.bf16.msra.mxu0 %v338
    %431 = vmatpush.bf16.msra.mxu0 %v334
    %432 = vmatpush.bf16.msra.mxu0 %v330
    %433 = vmatpush.bf16.msra.mxu0 %v326
    %434 = vmatmul.bf16.gmra.mxu0 %v184
    %v435 = vpop.f32.mrf.mxu0
    %v436 = vadd.f32 %v222, %v435
    %v437 = vpop.f32.mrf.mxu0
    %438 = vdwg.mxu0
    %v439 = vmax.f32 %v397, 0.0
    %v440 = vmax.f32 %v410, 0.0
    %v441 = vmax.f32 %v423, 0.0
    %v442 = vmax.f32 %v436, 0.0
    %v443 = vpack.c.bf16 %v439, %v439
    %v444 = vpack.c.bf16 %v440, %v440
    %v445 = vpack.c.bf16 %v441, %v441
    %v446 = vpack.c.bf16 %v442, %v442
    %v447 = vld [vmem:[#allocation10] sm:$0xf]
    %v448 = vld [vmem:[#allocation10 + $0x4] sm:$0xf]
    %v449 = vld [vmem:[#allocation10 + $0x8] sm:$0xf]
    %v450 = vld [vmem:[#allocation10 + $0xc] sm:$0xf]
    %v451 = vld [vmem:[#allocation10 + $0x10] sm:$0xf]
    %v452 = vld [vmem:[#allocation10 + $0x14] sm:$0xf]
    %v453 = vld [vmem:[#allocation10 + $0x18] sm:$0xf]
    %v454 = vld [vmem:[#allocation10 + $0x1c] sm:$0xf]
    %v455 = vld [vmem:[#allocation10 + $0x20] sm:$0xf]
    %v456 = vld [vmem:[#allocation10 + $0x24] sm:$0xf]
    %v457 = vld [vmem:[#allocation10 + $0x28] sm:$0xf]
    %v458 = vld [vmem:[#allocation10 + $0x2c] sm:$0xf]
    %v459 = vld [vmem:[#allocation10 + $0x30] sm:$0xf]
    %v460 = vld [vmem:[#allocation10 + $0x34] sm:$0xf]
    %v461 = vld [vmem:[#allocation10 + $0x38] sm:$0xf]
    %v462 = vld [vmem:[#allocation10 + $0x3c] sm:$0xf]
    %v463 = vld [vmem:[#allocation10 + $0x40] sm:$0xf]
    %v464 = vld [vmem:[#allocation10 + $0x44] sm:$0xf]
    %v465 = vld [vmem:[#allocation10 + $0x48] sm:$0xf]
    %v466 = vld [vmem:[#allocation10 + $0x4c] sm:$0xf]
    %v467 = vld [vmem:[#allocation10 + $0x50] sm:$0xf]
    %v468 = vld [vmem:[#allocation10 + $0x54] sm:$0xf]
    %v469 = vld [vmem:[#allocation10 + $0x58] sm:$0xf]
    %v470 = vld [vmem:[#allocation10 + $0x5c] sm:$0xf]
    %v471 = vld [vmem:[#allocation10 + $0x60] sm:$0xf]
    %v472 = vld [vmem:[#allocation10 + $0x64] sm:$0xf]
    %v473 = vld [vmem:[#allocation10 + $0x68] sm:$0xf]
    %v474 = vld [vmem:[#allocation10 + $0x6c] sm:$0xf]
    %v475 = vld [vmem:[#allocation10 + $0x70] sm:$0xf]
    %v476 = vld [vmem:[#allocation10 + $0x74] sm:$0xf]
    %v477 = vld [vmem:[#allocation10 + $0x78] sm:$0xf]
    %v478 = vld [vmem:[#allocation10 + $0x7c] sm:$0xf]
    %v479 = vld [vmem:[#allocation10 + $0x80] sm:$0xf]
    %v480 = vld [vmem:[#allocation10 + $0x84] sm:$0xf]
    %v481 = vld [vmem:[#allocation10 + $0x88] sm:$0xf]
    %v482 = vld [vmem:[#allocation10 + $0x8c] sm:$0xf]
    %v483 = vld [vmem:[#allocation10 + $0x90] sm:$0xf]
    %v484 = vld [vmem:[#allocation10 + $0x94] sm:$0xf]
    %v485 = vld [vmem:[#allocation10 + $0x98] sm:$0xf]
    %v486 = vld [vmem:[#allocation10 + $0x9c] sm:$0xf]
    %v487 = vld [vmem:[#allocation10 + $0xa0] sm:$0xf]
    %v488 = vld [vmem:[#allocation10 + $0xa4] sm:$0xf]
    %v489 = vld [vmem:[#allocation10 + $0xa8] sm:$0xf]
    %v490 = vld [vmem:[#allocation10 + $0xac] sm:$0xf]
    %v491 = vld [vmem:[#allocation10 + $0xb0] sm:$0xf]
    %v492 = vld [vmem:[#allocation10 + $0xb4] sm:$0xf]
    %v493 = vld [vmem:[#allocation10 + $0xb8] sm:$0xf]
    %v494 = vld [vmem:[#allocation10 + $0xbc] sm:$0xf]
    %v495 = vld [vmem:[#allocation10 + $0xc0] sm:$0xf]
    %v496 = vld [vmem:[#allocation10 + $0xc4] sm:$0xf]
    %v497 = vld [vmem:[#allocation10 + $0xc8] sm:$0xf]
    %v498 = vld [vmem:[#allocation10 + $0xcc] sm:$0xf]
    %v499 = vld [vmem:[#allocation10 + $0xd0] sm:$0xf]
    %v500 = vld [vmem:[#allocation10 + $0xd4] sm:$0xf]
    %v501 = vld [vmem:[#allocation10 + $0xd8] sm:$0xf]
    %v502 = vld [vmem:[#allocation10 + $0xdc] sm:$0xf]
    %v503 = vld [vmem:[#allocation10 + $0xe0] sm:$0xf]
    %v504 = vld [vmem:[#allocation10 + $0xe4] sm:$0xf]
    %v505 = vld [vmem:[#allocation10 + $0xe8] sm:$0xf]
    %v506 = vld [vmem:[#allocation10 + $0xec] sm:$0xf]
    %v507 = vld [vmem:[#allocation10 + $0xf0] sm:$0xf]
    %v508 = vld [vmem:[#allocation10 + $0xf4] sm:$0xf]
    %v509 = vld [vmem:[#allocation10 + $0xf8] sm:$0xf]
    %v510 = vld [vmem:[#allocation10 + $0xfc] sm:$0xf]
    %v511 = vld [vmem:[%s6] sm:$0x1]
    %v513 = vperm.slane %v511, 0
    %v579 = vunpack.c.l.b16 %v447
    %v580 = vunpack.c.l.b16 %v448
    %v581 = vunpack.c.l.b16 %v449
    %v582 = vunpack.c.l.b16 %v450
    %v583 = vunpack.c.l.b16 %v451
    %v584 = vunpack.c.l.b16 %v452
    %v585 = vunpack.c.l.b16 %v453
    %v586 = vunpack.c.l.b16 %v454
    %v587 = vunpack.c.l.b16 %v455
    %v588 = vunpack.c.l.b16 %v456
    %v589 = vunpack.c.l.b16 %v457
    %v590 = vunpack.c.l.b16 %v458
    %v591 = vunpack.c.l.b16 %v459
    %v592 = vunpack.c.l.b16 %v460
    %v593 = vunpack.c.l.b16 %v461
    %v594 = vunpack.c.l.b16 %v462
    %v595 = vunpack.c.l.b16 %v463
    %v596 = vunpack.c.l.b16 %v464
    %v597 = vunpack.c.l.b16 %v465
    %v598 = vunpack.c.l.b16 %v466
    %v599 = vunpack.c.l.b16 %v467
    %v600 = vunpack.c.l.b16 %v468
    %v601 = vunpack.c.l.b16 %v469
    %v602 = vunpack.c.l.b16 %v470
    %v603 = vunpack.c.l.b16 %v471
    %v604 = vunpack.c.l.b16 %v472
    %v605 = vunpack.c.l.b16 %v473
    %v606 = vunpack.c.l.b16 %v474
    %v607 = vunpack.c.l.b16 %v475
    %v608 = vunpack.c.l.b16 %v476
    %v609 = vunpack.c.l.b16 %v477
    %v610 = vunpack.c.l.b16 %v478
    %v611 = vunpack.c.l.b16 %v479
    %v612 = vunpack.c.l.b16 %v480
    %v613 = vunpack.c.l.b16 %v481
    %v614 = vunpack.c.l.b16 %v482
    %v615 = vunpack.c.l.b16 %v483
    %v616 = vunpack.c.l.b16 %v484
    %v617 = vunpack.c.l.b16 %v485
    %v618 = vunpack.c.l.b16 %v486
    %v619 = vunpack.c.l.b16 %v487
    %v620 = vunpack.c.l.b16 %v488
    %v621 = vunpack.c.l.b16 %v489
    %v622 = vunpack.c.l.b16 %v490
    %v623 = vunpack.c.l.b16 %v491
    %v624 = vunpack.c.l.b16 %v492
    %v625 = vunpack.c.l.b16 %v493
    %v626 = vunpack.c.l.b16 %v494
    %v627 = vunpack.c.l.b16 %v495
    %v628 = vunpack.c.l.b16 %v496
    %v629 = vunpack.c.l.b16 %v497
    %v630 = vunpack.c.l.b16 %v498
    %v631 = vunpack.c.l.b16 %v499
    %v632 = vunpack.c.l.b16 %v500
    %v633 = vunpack.c.l.b16 %v501
    %v634 = vunpack.c.l.b16 %v502
    %v635 = vunpack.c.l.b16 %v503
    %v636 = vunpack.c.l.b16 %v504
    %v637 = vunpack.c.l.b16 %v505
    %v638 = vunpack.c.l.b16 %v506
    %v639 = vunpack.c.l.b16 %v507
    %v640 = vunpack.c.l.b16 %v508
    %v641 = vunpack.c.l.b16 %v509
    %v642 = vunpack.c.l.b16 %v510
    %v643 = vpack.c.b16 %v580, %v579
    %v644 = vpack.c.b16 %v582, %v581
    %v645 = vpack.c.b16 %v584, %v583
    %v646 = vpack.c.b16 %v586, %v585
    %v647 = vpack.c.b16 %v588, %v587
    %v648 = vpack.c.b16 %v590, %v589
    %v649 = vpack.c.b16 %v592, %v591
    %v650 = vpack.c.b16 %v594, %v593
    %v651 = vpack.c.b16 %v596, %v595
    %v652 = vpack.c.b16 %v598, %v597
    %v653 = vpack.c.b16 %v600, %v599
    %v654 = vpack.c.b16 %v602, %v601
    %v655 = vpack.c.b16 %v604, %v603
    %v656 = vpack.c.b16 %v606, %v605
    %v657 = vpack.c.b16 %v608, %v607
    %v658 = vpack.c.b16 %v610, %v609
    %v659 = vpack.c.b16 %v612, %v611
    %v660 = vpack.c.b16 %v614, %v613
    %v661 = vpack.c.b16 %v616, %v615
    %v662 = vpack.c.b16 %v618, %v617
    %v663 = vpack.c.b16 %v620, %v619
    %v664 = vpack.c.b16 %v622, %v621
    %v665 = vpack.c.b16 %v624, %v623
    %v666 = vpack.c.b16 %v626, %v625
    %v667 = vpack.c.b16 %v628, %v627
    %v668 = vpack.c.b16 %v630, %v629
    %v669 = vpack.c.b16 %v632, %v631
    %v670 = vpack.c.b16 %v634, %v633
    %v671 = vpack.c.b16 %v636, %v635
    %v672 = vpack.c.b16 %v638, %v637
    %v673 = vpack.c.b16 %v640, %v639
    %v674 = vpack.c.b16 %v642, %v641
    %707 = vmatpush.bf16.msra.mxu0 %v650
    %708 = vmatpush.bf16.msra.mxu0 %v649
    %709 = vmatpush.bf16.msra.mxu0 %v648
    %710 = vmatpush.bf16.msra.mxu0 %v647
    %711 = vmatpush.bf16.msra.mxu0 %v646
    %712 = vmatpush.bf16.msra.mxu0 %v645
    %713 = vmatpush.bf16.msra.mxu0 %v644
    %714 = vmatpush.bf16.msra.mxu0 %v643
    %715 = vmatmul.bf16.gmra.mxu0 %v443
    %v716 = vpop.f32.mrf.mxu0
    %v717 = vadd.f32 %v513, %v716
    %v718 = vpop.f32.mrf.mxu0
    %719 = vdwg.mxu0
    %720 = vmatpush.bf16.msra.mxu0 %v658
    %721 = vmatpush.bf16.msra.mxu0 %v657
    %722 = vmatpush.bf16.msra.mxu0 %v656
    %723 = vmatpush.bf16.msra.mxu0 %v655
    %724 = vmatpush.bf16.msra.mxu0 %v654
    %725 = vmatpush.bf16.msra.mxu0 %v653
    %726 = vmatpush.bf16.msra.mxu0 %v652
    %727 = vmatpush.bf16.msra.mxu0 %v651
    %728 = vmatmul.bf16.gmra.mxu0 %v444
    %v729 = vpop.f32.mrf.mxu0
    %v730 = vadd.f32 %v717, %v729
    %v731 = vpop.f32.mrf.mxu0
    %732 = vdwg.mxu0
    %733 = vmatpush.bf16.msra.mxu0 %v666
    %734 = vmatpush.bf16.msra.mxu0 %v665
    %735 = vmatpush.bf16.msra.mxu0 %v664
    %736 = vmatpush.bf16.msra.mxu0 %v663
    %737 = vmatpush.bf16.msra.mxu0 %v662
    %738 = vmatpush.bf16.msra.mxu0 %v661
    %739 = vmatpush.bf16.msra.mxu0 %v660
    %740 = vmatpush.bf16.msra.mxu0 %v659
    %741 = vmatmul.bf16.gmra.mxu0 %v445
    %v742 = vpop.f32.mrf.mxu0
    %v743 = vadd.f32 %v730, %v742
    %v744 = vpop.f32.mrf.mxu0
    %745 = vdwg.mxu0
    %746 = vmatpush.bf16.msra.mxu0 %v674
    %747 = vmatpush.bf16.msra.mxu0 %v673
    %748 = vmatpush.bf16.msra.mxu0 %v672
    %749 = vmatpush.bf16.msra.mxu0 %v671
    %750 = vmatpush.bf16.msra.mxu0 %v670
    %751 = vmatpush.bf16.msra.mxu0 %v669
    %752 = vmatpush.bf16.msra.mxu0 %v668
    %753 = vmatpush.bf16.msra.mxu0 %v667
    %754 = vmatmul.bf16.gmra.mxu0 %v446
    %v755 = vpop.f32.mrf.mxu0
    %v756 = vadd.f32 %v743, %v755
    %v757 = vpop.f32.mrf.mxu0
    %758 = vdwg.mxu0
    %759 = vst [vmem:[#allocation11] sm:$0xff] %v756
    // Predicated region
    $region50: #{tpu_custom_call.1} parent=1 // pred_check
      _
    $region51: #{tpu_custom_call.1} parent=1 // pred_check_branch
      %761 = sbr.rel (0) target = $region53
    $region52: #{tpu_custom_call.1} parent=1 // pred_region
      %763 = vsyncadd [#allocation4], 0
      %s765 = sshll.u32 [#allocation11], 4
      %s766 = int_to_ptr.vmem [resolvable:$true] %s765
      %s767 = sshll.u32 %s7, 4
      %s768 = int_to_ptr.hbm [resolvable:$true] %s767
      %770 = dma.vmem_to_hbm [thread:$0]  %s766, 128, %s768, [#allocation4]
    $region53: #{tpu_custom_call.1} parent=1 // pred_fallthru
      _
    // Predicated region
    $region54: #{tpu_custom_call.1} parent=1 // pred_check
      _
    $region55: #{tpu_custom_call.1} parent=1 // pred_check_branch
      %772 = sbr.rel (0) target = $region57
    $region56: #{tpu_custom_call.1} parent=1 // pred_region
      %774 = dma.done [#allocation4], 128
    $region57: #{tpu_custom_call.1} parent=1 // pred_fallthru
      _
    %775 = vsyncpa [#allocation3], 1
    %776 = vsyncpa [#allocation6], 1
    %777 = vsyncpa [#allocation9], 1
    %778 = vsyncpa [#allocation4], 1

</llo_original>
